<compile_context>
chip_gen: v7x
topology: tpu7x:2x2x1
jax: 0.10.0
libtpu: 0.0.40
codegen_flags: <defaults>
</compile_context>

<pallas_src>
import math

import jax
import jax.numpy as jnp
from jax import lax
from jax.experimental import pallas as pl
from jax.experimental.pallas import tpu as pltpu


def _round_up(x: int, m: int) -> int:
    return ((x + m - 1) // m) * m


def _bilinear_weight_matrix(in_size: int, out_size: int) -> jnp.ndarray:
    """Row-stochastic (out_size, in_size) matrix reproducing torch bilinear
    interpolation along one axis (align_corners=False, no antialias)."""
    scale = in_size / out_size
    dst = jnp.arange(out_size, dtype=jnp.float32)
    src = (dst + 0.5) * scale - 0.5
    src = jnp.maximum(src, 0.0)                      # align_corners=False clamp
    i0 = jnp.floor(src).astype(jnp.int32)
    frac = src - i0.astype(jnp.float32)
    i0 = jnp.minimum(i0, in_size - 1)
    i1 = jnp.minimum(i0 + 1, in_size - 1)
    rows = jnp.arange(out_size)
    w = jnp.zeros((out_size, in_size), jnp.float32)
    w = w.at[rows, i0].add(1.0 - frac)
    w = w.at[rows, i1].add(frac)
    return w


def _vmem_capacity_bytes() -> int:
    """Per-core VMEM capacity (128 MiB on v5e/v6e, 64 MiB per TC on v7x)."""
    try:
        cap = int(pltpu.get_tpu_info().vmem_capacity_bytes)
        if cap > 0:
            return cap
    except Exception:
        pass
    return 64 << 20   # conservative fallback (v7x per-TC size)


def _make_resize_kernel(width_first: bool, compute_dtype):
    """Block shapes seen by the kernel:
         wh_ref:  (new_h_pad, h_in)        compute dtype   (shared)
         wwt_ref: (w, new_w_pad)           compute dtype   (shared)
         x_ref:   (bs, h_in, w)            native dtype
         o_ref:   (bs, new_h_pad, new_w_pad)  out dtype
         mid_ref: width-first  -> (bs, h_in,      new_w_pad)  compute dtype
                  height-first -> (bs, new_h_pad, w)          compute dtype
    """
    def kernel(wh_ref, wwt_ref, x_ref, o_ref, mid_ref):
        bs = x_ref.shape[0]
        wh = wh_ref[...]
        wwt = wwt_ref[...]

        if width_first:
            # Width resize as ONE shared-RHS slab matmul, then per-image
            # height resize (different RHS per image) in a fori_loop.
            hp, wdim = x_ref.shape[1], x_ref.shape[2]
            x2 = x_ref[...].astype(compute_dtype).reshape(bs * hp, wdim)
            slab = jnp.dot(x2, wwt, preferred_element_type=jnp.float32)
            mid_ref[...] = slab.reshape(bs, hp, wwt.shape[1]).astype(mid_ref.dtype)

            def body(bi, carry):
                o_ref[bi] = jnp.dot(
                    wh, mid_ref[bi], preferred_element_type=jnp.float32
                ).astype(o_ref.dtype)
                return carry

            lax.fori_loop(0, bs, body, 0)
        else:
            # Per-image height resize into the scratch slab, then ONE
            # shared-RHS (bs*new_h_pad, W) @ (W, new_w_pad) width matmul.
            def body(bi, carry):
                xi = x_ref[bi].astype(compute_dtype)
                mid_ref[bi] = jnp.dot(
                    wh, xi, preferred_element_type=jnp.float32
                ).astype(mid_ref.dtype)
                return carry

            lax.fori_loop(0, bs, body, 0)

            nhp, wdim = mid_ref.shape[1], mid_ref.shape[2]
            mid2 = mid_ref[...].reshape(bs * nhp, wdim)
            out = jnp.dot(mid2, wwt, preferred_element_type=jnp.float32)
            o_ref[...] = out.reshape(bs, nhp, wwt.shape[1]).astype(o_ref.dtype)

    return kernel


def short_side_scale_pallas(x: jnp.ndarray, size: int,
                            interpolation: str = "bilinear") -> jnp.ndarray:
    assert x.ndim == 4, "expected (C, T, H, W)"
    # TODO(synk): only 'bilinear' interpolation (the module default) is implemented.
    assert interpolation == "bilinear"
    c, t, h, w = x.shape
    if w < h:
        new_h = int(math.floor(float(h) / w * size))
        new_w = size
        width_first = True            # resize the side mapped to `size` first
    else:
        new_h = size
        new_w = int(math.floor(float(w) / h * size))
        width_first = False

    # --- compute / output dtypes -------------------------------------------
    if x.dtype == jnp.bfloat16:
        compute_dtype = jnp.bfloat16            # bf16 x bf16 MXU, f32 acc
    elif (jnp.issubdtype(x.dtype, jnp.integer)
          and jnp.dtype(x.dtype).itemsize == 1):
        compute_dtype = jnp.bfloat16            # 0..255 exact in bf16; no int MXU on v7x
    else:
        compute_dtype = jnp.float32             # f32 inputs keep the f32 path
    out_dtype = x.dtype if jnp.issubdtype(x.dtype, jnp.floating) else jnp.float32

    # --- padded geometry (lane-dense stores, tile-aligned collapses) --------
    new_w_pad = _round_up(new_w, 128)
    new_h_pad = _round_up(new_h, 8)
    h_in = _round_up(h, 8) if width_first else h

    n = c * t
    x_flat = x.reshape(n, h, w)
    if h_in != h:
        x_flat = jnp.pad(x_flat, ((0, 0), (0, h_in - h), (0, 0)))

    wh = _bilinear_weight_matrix(h, new_h)                       # (new_h, h)
    wh = jnp.pad(wh, ((0, new_h_pad - new_h), (0, h_in - h)))    # zero rows/cols
    wwt = _bilinear_weight_matrix(w, new_w).T                    # (w, new_w)
    wwt = jnp.pad(wwt, ((0, 0), (0, new_w_pad - new_w)))         # zero cols
    wh = wh.astype(compute_dtype)
    wwt = wwt.astype(compute_dtype)

    in_bytes = jnp.dtype(x.dtype).itemsize
    out_bytes = jnp.dtype(out_dtype).itemsize
    cbytes = jnp.dtype(compute_dtype).itemsize
    wbytes = int(wh.size + wwt.size) * cbytes

    if width_first:
        mid_h, mid_w = h_in, new_w_pad
    else:
        mid_h, mid_w = new_h_pad, w

    def footprint(bsz: int) -> int:
        in_blk = bsz * h_in * w * in_bytes
        out_blk = bsz * new_h_pad * new_w_pad * out_bytes
        mid_blk = bsz * mid_h * mid_w * cbytes
        # live slab temporaries: cast input + f32 dot result before the cast
        if width_first:
            temps = bsz * h_in * w * cbytes + bsz * h_in * new_w_pad * 4
        else:
            temps = bsz * new_h_pad * w * cbytes + bsz * new_h_pad * new_w_pad * 4
        return 2 * (in_blk + out_blk) + mid_blk + temps + 2 * wbytes

    cap = _vmem_capacity_bytes()
    budget = int(0.70 * cap)                 # generation-aware block budget

    max_bs = 1
    for cand in range(1, min(n, 256) + 1):
        if footprint(cand) <= budget:
            max_bs = cand
        else:
            break

    cdiv = lambda a, b: -(-a // b)
    if n > max_bs:
        bs = max_bs
        # Prefer an even number of grid steps (v7x shards the parallel axis
        # across 2 TensorCores) without giving up much block size.
        for cand in range(max_bs, max(1, (3 * max_bs) // 5) - 1, -1):
            if cdiv(n, cand) % 2 == 0:
                bs = cand
                break
    else:
        bs = n
        if n >= 2 and footprint(cdiv(n, 2)) <= budget:
            bs = cdiv(n, 2)                  # 2 steps -> both v7x cores busy
    grid = (cdiv(n, bs),)

    need = footprint(bs) + (8 << 20)         # + compiler scratch headroom
    vmem_cap = min(int(0.85 * cap), 100 << 20)
    vmem_limit = int(min(max(need, 32 << 20), vmem_cap))
    # TODO(synk): frames with footprint(1) > budget (e.g. 4K f32 on v7x) would
    # need an output-height-banded grid axis; not implemented here.

    if width_first:
        flops = 2 * n * (h_in * w * new_w_pad + new_h_pad * h_in * new_w_pad)
    else:
        flops = 2 * n * (new_h_pad * h * w + new_h_pad * w * new_w_pad)
    bytes_accessed = int(n * h_in * w * in_bytes
                         + n * new_h_pad * new_w_pad * out_bytes + wbytes)

    out = pl.pallas_call(
        _make_resize_kernel(width_first, compute_dtype),
        out_shape=jax.ShapeDtypeStruct((n, new_h_pad, new_w_pad), out_dtype),
        grid_spec=pltpu.PrefetchScalarGridSpec(
            num_scalar_prefetch=0,
            grid=grid,
            in_specs=[
                pl.BlockSpec((new_h_pad, h_in), lambda i: (0, 0)),   # Wh (shared)
                pl.BlockSpec((w, new_w_pad), lambda i: (0, 0)),      # WwT (shared)
                pl.BlockSpec((bs, h_in, w), lambda i: (i, 0, 0)),    # bs images/step
            ],
            out_specs=pl.BlockSpec((bs, new_h_pad, new_w_pad),
                                   lambda i: (i, 0, 0)),
            scratch_shapes=[pltpu.VMEM((bs, mid_h, mid_w), compute_dtype)],
        ),
        compiler_params=pltpu.CompilerParams(
            dimension_semantics=("parallel",),
            vmem_limit_bytes=vmem_limit,
        ),
        cost_estimate=pl.CostEstimate(flops=flops, transcendentals=0,
                                      bytes_accessed=bytes_accessed),
    )(wh, wwt, x_flat)

    # TODO(synk): downstream consumers could take the padded
    # (n, new_h_pad, new_w_pad) layout directly and skip this extra HBM pass.
    out = out[:, :new_h, :new_w]
    return out.reshape(c, t, new_h, new_w)


class ShortSideScale:
    """JAX/Pallas equivalent of the PyTorch ShortSideScale nn.Module."""

    def __init__(self, size: int, interpolation: str = "bilinear",
                 backend: str = "pytorch"):
        assert backend in ("pytorch", "opencv")
        # TODO(synk): opencv backend (different bilinear rounding) not reproduced;
        # only the pytorch backend semantics are implemented.
        self._size = size
        self._interpolation = interpolation
        self._backend = backend

    def __call__(self, x: jnp.ndarray) -> jnp.ndarray:
        return short_side_scale_pallas(x, self._size, self._interpolation)


def _reference(x: jnp.ndarray, size: int) -> jnp.ndarray:
    c, t, h, w = x.shape
    if w < h:
        new_h, new_w = int(math.floor(float(h) / w * size)), size
    else:
        new_h, new_w = size, int(math.floor(float(w) / h * size))
    wh_m = _bilinear_weight_matrix(h, new_h)
    ww_m = _bilinear_weight_matrix(w, new_w)
    return jnp.einsum("oh,cthw,pw->ctop", wh_m, x.astype(jnp.float32), ww_m)


if __name__ == "__main__":
    key = jax.random.PRNGKey(0)
    size = 8

    # --- landscape (w > h): height-first branch, non-divisible batch --------
    C, T, H, W = 3, 5, 16, 24          # n = 15 -> exercises cdiv partial block
    x = jax.random.normal(key, (C, T, H, W), dtype=jnp.float32)
    y = ShortSideScale(size=size)(x)
    jax.block_until_ready(y)
    assert y.shape == (C, T, 8, 12), y.shape
    assert y.dtype == x.dtype
    ref = _reference(x, size)
    err = float(jnp.max(jnp.abs(y.astype(jnp.float32) - ref)))
    assert err < 1e-4, err

    # --- portrait (h > w): width-first slab branch ---------------------------
    C2, T2, H2, W2 = 2, 3, 24, 16
    x2 = jax.random.normal(jax.random.PRNGKey(1), (C2, T2, H2, W2),
                           dtype=jnp.float32)
    y2 = ShortSideScale(size=size)(x2)
    jax.block_until_ready(y2)
    assert y2.shape == (C2, T2, 12, 8), y2.shape
    ref2 = _reference(x2, size)
    err2 = float(jnp.max(jnp.abs(y2.astype(jnp.float32) - ref2)))
    assert err2 < 1e-4, err2

    # --- bf16 fast path -------------------------------------------------------
    xb = x.astype(jnp.bfloat16)
    yb = ShortSideScale(size=size)(xb)
    jax.block_until_ready(yb)
    assert yb.shape == (C, T, 8, 12), yb.shape
    assert yb.dtype == jnp.bfloat16
    errb = float(jnp.max(jnp.abs(yb.astype(jnp.float32) - ref)))
    assert errb < 0.15, errb

    print("KERNEL_OK")
</pallas_src>

<mosaic_0001>
module attributes {stable_mosaic.version = 11 : i64} {
  func.func @kernel(%arg0: i32, %arg1: memref<8x16xf32, #tpu.memory_space<vmem>>, %arg2: memref<24x128xf32, #tpu.memory_space<vmem>>, %arg3: memref<8x16x24xf32, #tpu.memory_space<vmem>>, %arg4: memref<8x8x128xf32, #tpu.memory_space<vmem>>, %arg5: memref<8x8x24xf32, #tpu.memory_space<vmem>>) attributes {dimension_semantics = [#tpu.dimension_semantics<parallel>], iteration_bounds = array<i64: 2>, scalar_prefetch = 0 : i64, scratch_operands = 1 : i64, tpu.core_type = #tpu.core_type<tc>, window_params = [{pipeline_mode = #tpu.pipeline_mode<synchronous>, transform_indices = @transform_0, window_bounds = array<i64: 8, 16>}, {pipeline_mode = #tpu.pipeline_mode<synchronous>, transform_indices = @transform_1, window_bounds = array<i64: 24, 128>}, {transform_indices = @transform_2, window_bounds = array<i64: 8, 16, 24>}, {transform_indices = @transform_3, window_bounds = array<i64: 8, 8, 128>}]} {
    %c0 = arith.constant 0 : index
    %c0_0 = arith.constant 0 : index
    %0 = vector.load %arg1[%c0, %c0_0] : memref<8x16xf32, #tpu.memory_space<vmem>>, vector<8x16xf32>
    %c0_1 = arith.constant 0 : index
    %c0_2 = arith.constant 0 : index
    %1 = vector.load %arg2[%c0_1, %c0_2] : memref<24x128xf32, #tpu.memory_space<vmem>>, vector<24x128xf32>
    %c0_i32 = arith.constant 0 : i32
    %c8_i32 = arith.constant 8 : i32
    %2 = arith.addi %c0_i32, %c8_i32 : i32
    %c1_i32 = arith.constant 1 : i32
    scf.for %arg6 = %c0_i32 to %2 step %c1_i32  : i32 {
      %8 = arith.index_cast %arg6 : i32 to index
      %c0_10 = arith.constant 0 : index
      %c0_11 = arith.constant 0 : index
      %9 = vector.load %arg3[%8, %c0_10, %c0_11] : memref<8x16x24xf32, #tpu.memory_space<vmem>>, vector<1x16x24xf32>
      %10 = vector.shape_cast %9 : vector<1x16x24xf32> to vector<16x24xf32>
      %cst_12 = arith.constant dense<0.000000e+00> : vector<8x24xf32>
      %11 = tpu.matmul %0, %10, %cst_12 {dimension_numbers = #tpu.dot_dimension_numbers<[1], [0], [0], [1], [0, 0, 1, 1], [], []>} : vector<8x16xf32>, vector<16x24xf32>, vector<8x24xf32> -> vector<8x24xf32>
      %12 = arith.index_cast %arg6 : i32 to index
      %c0_13 = arith.constant 0 : index
      %c0_14 = arith.constant 0 : index
      %13 = vector.load %arg5[%12, %c0_13, %c0_14] : memref<8x8x24xf32, #tpu.memory_space<vmem>>, vector<1x8x24xf32>
      %14 = vector.shape_cast %13 : vector<1x8x24xf32> to vector<8x24xf32>
      %15 = vector.shape_cast %11 : vector<8x24xf32> to vector<1x8x24xf32>
      tpu.vector_store %arg5[%12, %c0_13, %c0_14], %15 {strides = array<i32>} : memref<8x8x24xf32, #tpu.memory_space<vmem>>, vector<1x8x24xf32>,
    }
    %c8_i32_3 = arith.constant 8 : i32
    %c0_4 = arith.constant 0 : index
    %c0_5 = arith.constant 0 : index
    %c0_6 = arith.constant 0 : index
    %3 = vector.load %arg5[%c0_4, %c0_5, %c0_6] : memref<8x8x24xf32, #tpu.memory_space<vmem>>, vector<8x8x24xf32>
    %4 = vector.shape_cast %3 : vector<8x8x24xf32> to vector<64x24xf32>
    %cst = arith.constant dense<0.000000e+00> : vector<64x128xf32>
    %5 = tpu.matmul %4, %1, %cst {dimension_numbers = #tpu.dot_dimension_numbers<[1], [0], [0], [1], [0, 0, 1, 1], [], []>} : vector<64x24xf32>, vector<24x128xf32>, vector<64x128xf32> -> vector<64x128xf32>
    %6 = vector.shape_cast %5 : vector<64x128xf32> to vector<8x8x128xf32>
    %c0_7 = arith.constant 0 : index
    %c0_8 = arith.constant 0 : index
    %c0_9 = arith.constant 0 : index
    %7 = vector.load %arg4[%c0_7, %c0_8, %c0_9] : memref<8x8x128xf32, #tpu.memory_space<vmem>>, vector<8x8x128xf32>
    tpu.vector_store %arg4[%c0_7, %c0_8, %c0_9], %6 {strides = array<i32>} : memref<8x8x128xf32, #tpu.memory_space<vmem>>, vector<8x8x128xf32>,
    return
  }
  func.func @transform_0(%arg0: i32) -> (i32, i32) {
    %c0_i32 = arith.constant 0 : i32
    %c0_i32_0 = arith.constant 0 : i32
    %c0_i32_1 = arith.constant 0 : i32
    return %c0_i32, %c0_i32_0 : i32, i32
  }
  func.func @transform_1(%arg0: i32) -> (i32, i32) {
    %c0_i32 = arith.constant 0 : i32
    %c0_i32_0 = arith.constant 0 : i32
    %c0_i32_1 = arith.constant 0 : i32
    return %c0_i32, %c0_i32_0 : i32, i32
  }
  func.func @transform_2(%arg0: i32) -> (i32, i32, i32) {
    %c0_i32 = arith.constant 0 : i32
    %c0_i32_0 = arith.constant 0 : i32
    %c0_i32_1 = arith.constant 0 : i32
    return %arg0, %c0_i32, %c0_i32_0 : i32, i32, i32
  }
  func.func @transform_3(%arg0: i32) -> (i32, i32, i32) {
    %c0_i32 = arith.constant 0 : i32
    %c0_i32_0 = arith.constant 0 : i32
    %c0_i32_1 = arith.constant 0 : i32
    return %arg0, %c0_i32, %c0_i32_0 : i32, i32, i32
  }
}

</mosaic_0001>

<llo_original>
// kernel: tpu_custom_call.1
$region0: #{tpu_custom_call.1}
  #allocation0 [shape = 'u32[]', space=smem, size = 0x4, offset = 0x4, fixed_abs, tag = 'smem constant byte address 0x4 - core index']
  #allocation1 [shape = 'u32[144,128]{1,0:T(1,128)}', space=vmem, size = 0x12000, scoped, tag = 'internal scratch']
  #allocation2 [shape = 'f32[8,8,24]{2,1,0:T(8,128)}', space=vmem, size = 0x8000, scoped, tag = 'scratch operand']
  %s0 = inlined_call_operand.hbm [shape: f32[8,16], index: 0, kind: input, shape index: {}]
  %s1 = inlined_call_operand.hbm [shape: f32[24,128], index: 1, kind: input, shape index: {}]
  %s2 = inlined_call_operand.hbm [shape: f32[15,16,24], index: 2, kind: input, shape index: {}]
  %s3 = inlined_call_operand.hbm [shape: f32[15,8,128], index: 3, kind: output, shape index: {}]
  %s4 = sld [smem:[#allocation0]]
  $region64: #{tpu_custom_call.1} parent=0
    _
  %s6 = ssub.s32 1, %s4
  %s7 = scalar_select 0, %s6, %s4
  $region1: #{tpu_custom_call.1} parent=0
    #allocation3 [shape = 'u8[4096]{0}', space=vmem, size = 0x1000, scoped, tag = 'input window, operand 0, single buffered']
    #allocation4 [shape = 's32[2]{0}', space=sflag, size = 0x8, scoped, tag = 'scoped memory for tpu_custom_call.1']
    #allocation5 [shape = 's32[2]{0}', space=sflag, size = 0x8, scoped, tag = 'scoped memory for tpu_custom_call.1']
    #allocation6 [shape = 'u8[12288]{0}', space=vmem, size = 0x3000, scoped, tag = 'input window, operand 1, single buffered']
    #allocation7 [shape = 's32[1]{0}', space=sflag, size = 0x4, scoped, tag = 'scoped memory for tpu_custom_call.1']
    #allocation8 [shape = 'u8[131072]{0}', space=vmem, size = 0x20000, scoped, tag = 'input window, operand 2']
    #allocation9 [shape = 'u8[65536]{0}', space=vmem, size = 0x10000, scoped, tag = 'output window, operand 0']
    %8 = vsyncpa [#allocation4], 0
    %9 = vsyncpa [#allocation7], 0
    %10 = vsyncpa [#allocation5], 0
    %s11 = scalar_lea.sflag [#allocation5], 1
    %12 = vsyncpa %s11, 0
    loop: start=0, step=1, limit=4
    $region2: #{tpu_custom_call.1} parent=1 // loop_pre_header
      _
    $region3: #{tpu_custom_call.1} parent=1 // loop_header
      %s14 = sphi 0, %s18
      %p15 = scmp.ge.s32.totalorder %s14, 4
      %s22 = sphi 0, %s22
      %s24 = sphi 0, %s22
      %s25 = sphi 0, %s24
      %s39 = sphi 0, %s25
      %s43 = sphi 0, %s43
      %s45 = sphi 0, %s43
      %s46 = sphi 0, %s45
      %s60 = sphi 0, %s46
      %s66 = sphi 0, %s68
      %s69 = sphi 0, %s66
      %s70 = sphi 0, %s69
      %s86 = sphi 0, %s70
      %s92 = sphi 0, %s94
      %s95 = sphi 0, %s92
      %s96 = sphi 0, %s95
      %s112 = sphi 0, %s96
    $region4: #{tpu_custom_call.1} parent=1 // loop_header_branch
      %17 = sbr.rel (%p15) target = $region8
    $region5: #{tpu_custom_call.1} parent=1 // loop_body
      %s19 = ssub.s32 %s14, 1
      %s20 = ssub.s32 %s14, 2
      %s21 = sadd.s32 %s14, 1
      %s23 = sadd.s32 %s22, 1
      %p26 = scmp.eq.s32.totalorder %s14, 1
      %p27 = scmp.ne.s32.totalorder %s22, %s24
      %p28 = scmp.eq.s32.totalorder %s14, 0
      %p29 = por %p27, %p28
      %p30 = scmp.ne.s32.totalorder %s22, %s24
      %p31 = scmp.eq.s32.totalorder %s19, 1
      %p32 = por %p30, %p31
      %p33 = scmp.ne.s32.totalorder %s24, %s25
      %p34 = scmp.eq.s32.totalorder %s19, 0
      %p35 = por %p33, %p34
      %p36 = scmp.ne.s32.totalorder %s24, %s25
      %p37 = scmp.eq.s32.totalorder %s20, 1
      %p38 = por %p36, %p37
      %p40 = scmp.ne.s32.totalorder %s25, %s39
      %p41 = scmp.eq.s32.totalorder %s20, 0
      %p42 = por %p40, %p41
      %s44 = sadd.s32 %s43, 1
      %p47 = scmp.eq.s32.totalorder %s14, 1
      %p48 = scmp.ne.s32.totalorder %s43, %s45
      %p49 = scmp.eq.s32.totalorder %s14, 0
      %p50 = por %p48, %p49
      %p51 = scmp.ne.s32.totalorder %s43, %s45
      %p52 = scmp.eq.s32.totalorder %s19, 1
      %p53 = por %p51, %p52
      %p54 = scmp.ne.s32.totalorder %s45, %s46
      %p55 = scmp.eq.s32.totalorder %s19, 0
      %p56 = por %p54, %p55
      %p57 = scmp.ne.s32.totalorder %s45, %s46
      %p58 = scmp.eq.s32.totalorder %s20, 1
      %p59 = por %p57, %p58
      %p61 = scmp.ne.s32.totalorder %s46, %s60
      %p62 = scmp.eq.s32.totalorder %s20, 0
      %p63 = por %p61, %p62
      %s64 = ssub.s32 %s14, %s21
      %p65 = scmp.eq.s32.totalorder %s64, 0
      %s67 = sadd.s32 %s66, 1
      %s68 = scalar_select %p65, %s66, %s67
      %p71 = pneg %p65
      %p72 = scmp.eq.s32.totalorder %s14, 1
      %p73 = por %p71, %p72
      %p74 = scmp.ne.s32.totalorder %s66, %s69
      %p75 = scmp.eq.s32.totalorder %s14, 0
      %p76 = por %p74, %p75
      %p77 = scmp.ne.s32.totalorder %s66, %s69
      %p78 = scmp.eq.s32.totalorder %s19, 1
      %p79 = por %p77, %p78
      %p80 = scmp.ne.s32.totalorder %s69, %s70
      %p81 = scmp.eq.s32.totalorder %s19, 0
      %p82 = por %p80, %p81
      %p83 = scmp.ne.s32.totalorder %s69, %s70
      %p84 = scmp.eq.s32.totalorder %s20, 1
      %p85 = por %p83, %p84
      %p87 = scmp.ne.s32.totalorder %s70, %s86
      %p88 = scmp.eq.s32.totalorder %s20, 0
      %p89 = por %p87, %p88
      %s90 = ssub.s32 %s14, %s21
      %p91 = scmp.eq.s32.totalorder %s90, 0
      %s93 = sadd.s32 %s92, 1
      %s94 = scalar_select %p91, %s92, %s93
      %p97 = pneg %p91
      %p98 = scmp.eq.s32.totalorder %s14, 1
      %p99 = por %p97, %p98
      %p100 = scmp.ne.s32.totalorder %s92, %s95
      %p101 = scmp.eq.s32.totalorder %s14, 0
      %p102 = por %p100, %p101
      %p103 = scmp.ne.s32.totalorder %s92, %s95
      %p104 = scmp.eq.s32.totalorder %s19, 1
      %p105 = por %p103, %p104
      %p106 = scmp.ne.s32.totalorder %s95, %s96
      %p107 = scmp.eq.s32.totalorder %s19, 0
      %p108 = por %p106, %p107
      %p109 = scmp.ne.s32.totalorder %s95, %s96
      %p110 = scmp.eq.s32.totalorder %s20, 1
      %p111 = por %p109, %p110
      %p113 = scmp.ne.s32.totalorder %s96, %s112
      %p114 = scmp.eq.s32.totalorder %s20, 0
      %p115 = por %p113, %p114
      %p116 = scmp.le.s32.totalorder 1, %s14
      %p117 = scmp.lt.s32.totalorder %s14, 3
      %p118 = pnand %p116, %p117
      %p119 = pneg %p118
      // Predicated region
      $region9: #{tpu_custom_call.1} parent=5 // pred_check
        _
      $region10: #{tpu_custom_call.1} parent=5 // pred_check_branch
        %121 = sbr.rel (%p118) target = $region12
      $region11: #{tpu_custom_call.1} parent=5 // pred_region
        %s122 = ssub.s32 %s14, 1
        // Predicated region
        $region13: #{tpu_custom_call.1} parent=11 // pred_check
          %p123 = pneg %p35
        $region14: #{tpu_custom_call.1} parent=11 // pred_check_branch
          %125 = sbr.rel (%p123) target = $region16
        $region15: #{tpu_custom_call.1} parent=11 // pred_region
          %s127 = ssub.s32 128, 128
          %128 = vsyncadd [#allocation4], %s127
          %s130 = sshll.u32 [#allocation3], 4
          %s131 = int_to_ptr.vmem [resolvable:$true] %s130
          %133 = dma.hbm_to_vmem [thread:$0]  %s0, 128, %s131, [#allocation4]
        $region16: #{tpu_custom_call.1} parent=11 // pred_fallthru
          _
        // Predicated region
        $region17: #{tpu_custom_call.1} parent=11 // pred_check
          %p134 = pneg %p56
        $region18: #{tpu_custom_call.1} parent=11 // pred_check_branch
          %136 = sbr.rel (%p134) target = $region20
        $region19: #{tpu_custom_call.1} parent=11 // pred_region
          %s138 = ssub.s32 384, 384
          %139 = vsyncadd [#allocation7], %s138
          %s140 = sshll.u32 [#allocation6], 4
          %s141 = int_to_ptr.vmem [resolvable:$true] %s140
          %146 = dma.hbm_to_vmem [thread:$0]  %s1, 384, %s141, [#allocation7], 128, 128, 8
        $region20: #{tpu_custom_call.1} parent=11 // pred_fallthru
          _
      $region12: #{tpu_custom_call.1} parent=5 // pred_fallthru
        _
      %p147 = scmp.lt.s32.totalorder %s14, 2
      // Predicated region
      $region21: #{tpu_custom_call.1} parent=5 // pred_check
        %p148 = pneg %p147
      $region22: #{tpu_custom_call.1} parent=5 // pred_check_branch
        %150 = sbr.rel (%p148) target = $region24
      $region23: #{tpu_custom_call.1} parent=5 // pred_region
        // Predicated region
        $region25: #{tpu_custom_call.1} parent=23 // pred_check
          %p151 = pneg %p76
        $region26: #{tpu_custom_call.1} parent=23 // pred_check_branch
          %153 = sbr.rel (%p151) target = $region28
        $region27: #{tpu_custom_call.1} parent=23 // pred_region
          %s154 = sand.u32 %s14, 1
          %s155 = scalar_lea.sflag [#allocation4], %s154
          %s156 = sand.u32 %s66, 1
          %s157 = smul.addr %s156, 128
          %s158 = scalar_lea.vmem [#allocation8], %s157
          %s159 = smul.u32 8, %s14
          %s160 = ssub.s32 15, %s159
          %p161 = scmp.lt.s32.totalorder %s160, 8
          %s162 = scalar_select %p161, %s160, 8
          %s163 = smul.u32 128, %s162
          %s164 = smul.u32 %s163, 2
          %s166 = ssub.s32 2048, %s164
          %167 = vsyncadd %s155, %s166
          %p168 = scmp.ne.s32.totalorder 0, %s164
          %s169 = smul.addr %s159, 2
          %s170 = smul.addr %s169, 128
          %s171 = scalar_lea.hbm %s2, %s170
          %s172 = smul.u32 %s162, 2
          %s173 = smul.u32 8, %s172
          %s174 = sshll.u32 %s158, 4
          %s175 = int_to_ptr.vmem [resolvable:$true] %s174
          %s176 = sshll.u32 %s173, 4
          %180 = dma.hbm_to_vmem [thread:$0]  (%p168), %s171, %s176, %s175, %s155, 128, 128, 8
        $region28: #{tpu_custom_call.1} parent=23 // pred_fallthru
          _
      $region24: #{tpu_custom_call.1} parent=5 // pred_fallthru
        _
      %p181 = scmp.le.s32.totalorder 1, %s14
      %p182 = scmp.lt.s32.totalorder %s14, 3
      %p183 = pnand %p181, %p182
      %p184 = pneg %p183
      // Predicated region
      $region29: #{tpu_custom_call.1} parent=5 // pred_check
        _
      $region30: #{tpu_custom_call.1} parent=5 // pred_check_branch
        %186 = sbr.rel (%p183) target = $region32
      $region31: #{tpu_custom_call.1} parent=5 // pred_region
        %s187 = ssub.s32 %s14, 1
        // Predicated region
        $region33: #{tpu_custom_call.1} parent=31 // pred_check
          %p188 = pneg %p35
        $region34: #{tpu_custom_call.1} parent=31 // pred_check_branch
          %190 = sbr.rel (%p188) target = $region36
        $region35: #{tpu_custom_call.1} parent=31 // pred_region
          %191 = dma.done [#allocation4], 128
        $region36: #{tpu_custom_call.1} parent=31 // pred_fallthru
          _
        // Predicated region
        $region37: #{tpu_custom_call.1} parent=31 // pred_check
          %p192 = pneg %p56
        $region38: #{tpu_custom_call.1} parent=31 // pred_check_branch
          %194 = sbr.rel (%p192) target = $region40
        $region39: #{tpu_custom_call.1} parent=31 // pred_region
          %195 = dma.done [#allocation7], 384
        $region40: #{tpu_custom_call.1} parent=31 // pred_fallthru
          _
        %s196 = sand.u32 %s19, 1
        %s197 = scalar_lea.sflag [#allocation4], %s196
        %s198 = sand.u32 %s69, 1
        %s199 = smul.addr %s198, 128
        %s200 = scalar_lea.vmem [#allocation8], %s199
        // Predicated region
        $region41: #{tpu_custom_call.1} parent=31 // pred_check
          %p201 = pneg %p82
        $region42: #{tpu_custom_call.1} parent=31 // pred_check_branch
          %203 = sbr.rel (%p201) target = $region44
        $region43: #{tpu_custom_call.1} parent=31 // pred_region
          %204 = dma.done %s197, 2048
        $region44: #{tpu_custom_call.1} parent=31 // pred_fallthru
          _
        %p205 = pneg %p35
        %p206 = pneg %p32
        %p207 = pneg %p56
        %p208 = pneg %p53
        %s209 = sand.u32 %s19, 1
        %s210 = scalar_lea.sflag [#allocation4], %s209
        %s211 = sand.u32 %s69, 1
        %s212 = smul.addr %s211, 128
        %s213 = scalar_lea.vmem [#allocation8], %s212
        %p214 = pneg %p82
        %p215 = pneg %p79
        %p216 = pneg %p108
        %p217 = pneg %p105
        %s218 = sand.u32 %s95, 1
        %s219 = scalar_lea.sflag [#allocation5], %s218
        %s220 = sand.u32 %s95, 1
        %s221 = smul.addr %s220, 64
        %s222 = scalar_lea.vmem [#allocation9], %s221
        %s223 = smul.u32 8, %s19
        %s224 = ssub.s32 15, %s223
        %p225 = scmp.lt.s32.totalorder %s224, 8
        %s226 = scalar_select %p225, %s224, 8
        %s227 = smul.u32 128, %s226
        %s228 = smul.u32 %s227, 2
        %s229 = smul.u32 8, %s19
        %s230 = ssub.s32 15, %s229
        %p231 = scmp.lt.s32.totalorder %s230, 8
        %s232 = scalar_select %p231, %s230, 8
        %s233 = smul.u32 128, %s232
        %v234 = vld [vmem:[#allocation3] sm:$0xff]
        %v235 = vld [vmem:[#allocation6] sm:$0xff]
        %v236 = vld [vmem:[#allocation6 + $0x8] sm:$0xff]
        %v237 = vld [vmem:[#allocation6 + $0x10] sm:$0xff]
        loop: start=0, step=1, limit=8
        $region45: #{tpu_custom_call.1} parent=31 // loop_pre_header
          _
        $region46: #{tpu_custom_call.1} parent=31 // loop_header
          %s239 = sphi 0, %s243
          %p240 = scmp.ge.s32.totalorder %s239, 8
        $region47: #{tpu_custom_call.1} parent=31 // loop_header_branch
          %242 = sbr.rel (%p240) target = $region51
        $region48: #{tpu_custom_call.1} parent=31 // loop_body
          %s244 = smul.u32 %s239, 16
          %s245 = scalar_lea.vmem %s200, %s244 [#allocation8]
          %v246 = vld [vmem:[%s245] sm:$0xff]
          %v247 = vld [vmem:[%s245 + $0x8] sm:$0xff]
          %vm248 = vcmask 130048
          %v250 = vsel %vm248, %v234, 0
          %252 = vmatprep.subr.mxu0 0.0
          %253 = vmatpush1.msra.mxu0 %v246
          %254 = vmatprep.subr.mxu0 0.0
          %255 = vmatpush1.msra.mxu0 %v247
          %256 = vmatprep.subr.mxu0 0.0
          %257 = vmatpush1.msra.mxu0 0.0
          %258 = vmatprep.subr.mxu0 0.0
          %259 = vmatpush1.msra.mxu0 0.0
          %260 = vmatprep.subr.mxu0 0.0
          %261 = vmatpush1.msra.mxu0 0.0
          %262 = vmatprep.subr.mxu0 0.0
          %263 = vmatpush1.msra.mxu0 0.0
          %264 = vmatprep.subr.mxu0 0.0
          %265 = vmatpush1.msra.mxu0 0.0
          %266 = vmatprep.subr.mxu0 0.0
          %267 = vmatpush1.msra.mxu0 0.0
          %268 = vmatprep.subr.mxu0 0.0
          %269 = vmatpush1.msra.mxu0 0.0
          %270 = vmatprep.subr.mxu0 0.0
          %271 = vmatpush1.msra.mxu0 0.0
          %272 = vmatprep.subr.mxu0 0.0
          %273 = vmatpush1.msra.mxu0 0.0
          %274 = vmatprep.subr.mxu0 0.0
          %275 = vmatpush1.msra.mxu0 0.0
          %276 = vmatprep.subr.mxu0 0.0
          %277 = vmatpush1.msra.mxu0 0.0
          %278 = vmatprep.subr.mxu0 0.0
          %279 = vmatpush1.msra.mxu0 0.0
          %280 = vmatprep.subr.mxu0 0.0
          %281 = vmatpush1.msra.mxu0 0.0
          %282 = vmatprep.subr.mxu0 0.0
          %283 = vmatpush1.msra.mxu0 0.0
          %284 = vmatprep.subr.mxu0 0.0
          %285 = vmatpush1.msra.mxu0 0.0
          %286 = vmatprep.subr.mxu0 0.0
          %287 = vmatpush1.msra.mxu0 0.0
          %288 = vmatprep.subr.mxu0 0.0
          %289 = vmatpush1.msra.mxu0 0.0
          %290 = vmatprep.subr.mxu0 0.0
          %291 = vmatpush1.msra.mxu0 0.0
          %292 = vmatprep.subr.mxu0 0.0
          %293 = vmatpush1.msra.mxu0 0.0
          %294 = vmatprep.subr.mxu0 0.0
          %295 = vmatpush1.msra.mxu0 0.0
          %296 = vmatprep.subr.mxu0 0.0
          %297 = vmatpush1.msra.mxu0 0.0
          %298 = vmatprep.subr.mxu0 0.0
          %299 = vmatpush1.msra.mxu0 0.0
          %300 = vmatprep.subr.mxu0 0.0
          %301 = vmatpush1.msra.mxu0 0.0
          %302 = vmatprep.subr.mxu0 0.0
          %303 = vmatpush1.msra.mxu0 0.0
          %304 = vmatprep.subr.mxu0 0.0
          %305 = vmatpush1.msra.mxu0 0.0
          %306 = vmatprep.subr.mxu0 0.0
          %307 = vmatpush1.msra.mxu0 0.0
          %308 = vmatprep.subr.mxu0 0.0
          %309 = vmatpush1.msra.mxu0 0.0
          %310 = vmatprep.subr.mxu0 0.0
          %311 = vmatpush1.msra.mxu0 0.0
          %312 = vmatprep.subr.mxu0 0.0
          %313 = vmatpush1.msra.mxu0 0.0
          %314 = vmatprep.subr.mxu0 0.0
          %315 = vmatpush1.msra.mxu0 0.0
          %316 = vmatprep.mubr.f32.mxu0 0.0
          %317 = vmatmul.mubr.f32.gmra.mrb[0].mxu0 %v250
          %v318 = vpop.f32.mrb[0].mxu0
          %v319 = vadd.f32 0.0, %v318
          %v320 = vpop.f32.mrb[0].mxu0
          %321 = vdwg.mxu0
          %s322 = smul.u32 %s239, 8
          %s323 = scalar_lea.vmem [#allocation2], %s322
          %vm324 = vcmask 195584
          %325 = vst.msk [vmem:[%s323] sm:$0xff] %vm324, %v319
        $region49: #{tpu_custom_call.1} parent=31 // loop_footer
          %s243 = sadd.s32 1, %s239
        $region50: #{tpu_custom_call.1} parent=31 // loop_footer_branch
          %238 = sbr.rel target = $region46
        $region51: #{tpu_custom_call.1} parent=31 // loop_exit
          _
        %v326 = vld [vmem:[#allocation2] sm:$0xff]
        %v327 = vld [vmem:[#allocation2 + $0x8] sm:$0xff]
        %v328 = vld [vmem:[#allocation2 + $0x10] sm:$0xff]
        %v329 = vld [vmem:[#allocation2 + $0x18] sm:$0xff]
        %v330 = vld [vmem:[#allocation2 + $0x20] sm:$0xff]
        %v331 = vld [vmem:[#allocation2 + $0x28] sm:$0xff]
        %v332 = vld [vmem:[#allocation2 + $0x30] sm:$0xff]
        %v333 = vld [vmem:[#allocation2 + $0x38] sm:$0xff]
        %vm334 = vcmask 195584
        %v336 = vsel %vm334, %v326, 0
        %v339 = vsel %vm334, %v327, 0
        %v342 = vsel %vm334, %v328, 0
        %v345 = vsel %vm334, %v329, 0
        %v348 = vsel %vm334, %v330, 0
        %v351 = vsel %vm334, %v331, 0
        %v354 = vsel %vm334, %v332, 0
        %v357 = vsel %vm334, %v333, 0
        %359 = vmatprep.subr.mxu0 0.0
        %360 = vmatpush1.msra.mxu0 %v235
        %361 = vmatprep.subr.mxu0 0.0
        %362 = vmatpush1.msra.mxu0 %v236
        %363 = vmatprep.subr.mxu0 0.0
        %364 = vmatpush1.msra.mxu0 %v237
        %365 = vmatprep.subr.mxu0 0.0
        %366 = vmatpush1.msra.mxu0 0.0
        %367 = vmatprep.subr.mxu0 0.0
        %368 = vmatpush1.msra.mxu0 0.0
        %369 = vmatprep.subr.mxu0 0.0
        %370 = vmatpush1.msra.mxu0 0.0
        %371 = vmatprep.subr.mxu0 0.0
        %372 = vmatpush1.msra.mxu0 0.0
        %373 = vmatprep.subr.mxu0 0.0
        %374 = vmatpush1.msra.mxu0 0.0
        %375 = vmatprep.subr.mxu0 0.0
        %376 = vmatpush1.msra.mxu0 0.0
        %377 = vmatprep.subr.mxu0 0.0
        %378 = vmatpush1.msra.mxu0 0.0
        %379 = vmatprep.subr.mxu0 0.0
        %380 = vmatpush1.msra.mxu0 0.0
        %381 = vmatprep.subr.mxu0 0.0
        %382 = vmatpush1.msra.mxu0 0.0
        %383 = vmatprep.subr.mxu0 0.0
        %384 = vmatpush1.msra.mxu0 0.0
        %385 = vmatprep.subr.mxu0 0.0
        %386 = vmatpush1.msra.mxu0 0.0
        %387 = vmatprep.subr.mxu0 0.0
        %388 = vmatpush1.msra.mxu0 0.0
        %389 = vmatprep.subr.mxu0 0.0
        %390 = vmatpush1.msra.mxu0 0.0
        %391 = vmatprep.subr.mxu0 0.0
        %392 = vmatpush1.msra.mxu0 0.0
        %393 = vmatprep.subr.mxu0 0.0
        %394 = vmatpush1.msra.mxu0 0.0
        %395 = vmatprep.subr.mxu0 0.0
        %396 = vmatpush1.msra.mxu0 0.0
        %397 = vmatprep.subr.mxu0 0.0
        %398 = vmatpush1.msra.mxu0 0.0
        %399 = vmatprep.subr.mxu0 0.0
        %400 = vmatpush1.msra.mxu0 0.0
        %401 = vmatprep.subr.mxu0 0.0
        %402 = vmatpush1.msra.mxu0 0.0
        %403 = vmatprep.subr.mxu0 0.0
        %404 = vmatpush1.msra.mxu0 0.0
        %405 = vmatprep.subr.mxu0 0.0
        %406 = vmatpush1.msra.mxu0 0.0
        %407 = vmatprep.subr.mxu0 0.0
        %408 = vmatpush1.msra.mxu0 0.0
        %409 = vmatprep.subr.mxu0 0.0
        %410 = vmatpush1.msra.mxu0 0.0
        %411 = vmatprep.subr.mxu0 0.0
        %412 = vmatpush1.msra.mxu0 0.0
        %413 = vmatprep.subr.mxu0 0.0
        %414 = vmatpush1.msra.mxu0 0.0
        %415 = vmatprep.subr.mxu0 0.0
        %416 = vmatpush1.msra.mxu0 0.0
        %417 = vmatprep.subr.mxu0 0.0
        %418 = vmatpush1.msra.mxu0 0.0
        %419 = vmatprep.subr.mxu0 0.0
        %420 = vmatpush1.msra.mxu0 0.0
        %421 = vmatprep.subr.mxu0 0.0
        %422 = vmatpush1.msra.mxu0 0.0
        %423 = vmatprep.mubr.f32.mxu0 0.0
        %424 = vmatmul.mubr.f32.gmra.mrb[0].mxu0 %v336
        %v425 = vpop.f32.mrb[0].mxu0
        %v426 = vadd.f32 0.0, %v425
        %v427 = vpop.f32.mrb[0].mxu0
        %428 = vmatprep.mubr.f32.mxu0 0.0
        %429 = vmatmul.mubr.f32.gmra.mrb[0].mxu0 %v339
        %v430 = vpop.f32.mrb[0].mxu0
        %v431 = vadd.f32 0.0, %v430
        %v432 = vpop.f32.mrb[0].mxu0
        %433 = vmatprep.mubr.f32.mxu0 0.0
        %434 = vmatmul.mubr.f32.gmra.mrb[0].mxu0 %v342
        %v435 = vpop.f32.mrb[0].mxu0
        %v436 = vadd.f32 0.0, %v435
        %v437 = vpop.f32.mrb[0].mxu0
        %438 = vmatprep.mubr.f32.mxu0 0.0
        %439 = vmatmul.mubr.f32.gmra.mrb[0].mxu0 %v345
        %v440 = vpop.f32.mrb[0].mxu0
        %v441 = vadd.f32 0.0, %v440
        %v442 = vpop.f32.mrb[0].mxu0
        %443 = vmatprep.mubr.f32.mxu0 0.0
        %444 = vmatmul.mubr.f32.gmra.mrb[0].mxu0 %v348
        %v445 = vpop.f32.mrb[0].mxu0
        %v446 = vadd.f32 0.0, %v445
        %v447 = vpop.f32.mrb[0].mxu0
        %448 = vmatprep.mubr.f32.mxu0 0.0
        %449 = vmatmul.mubr.f32.gmra.mrb[0].mxu0 %v351
        %v450 = vpop.f32.mrb[0].mxu0
        %v451 = vadd.f32 0.0, %v450
        %v452 = vpop.f32.mrb[0].mxu0
        %453 = vmatprep.mubr.f32.mxu0 0.0
        %454 = vmatmul.mubr.f32.gmra.mrb[0].mxu0 %v354
        %v455 = vpop.f32.mrb[0].mxu0
        %v456 = vadd.f32 0.0, %v455
        %v457 = vpop.f32.mrb[0].mxu0
        %458 = vmatprep.mubr.f32.mxu0 0.0
        %459 = vmatmul.mubr.f32.gmra.mrb[0].mxu0 %v357
        %v460 = vpop.f32.mrb[0].mxu0
        %v461 = vadd.f32 0.0, %v460
        %v462 = vpop.f32.mrb[0].mxu0
        %463 = vdwg.mxu0
        %464 = vst [vmem:[%s222] sm:$0xff] %v426
        %465 = vst [vmem:[%s222 + $0x8] sm:$0xff] %v431
        %466 = vst [vmem:[%s222 + $0x10] sm:$0xff] %v436
        %467 = vst [vmem:[%s222 + $0x18] sm:$0xff] %v441
        %468 = vst [vmem:[%s222 + $0x20] sm:$0xff] %v446
        %469 = vst [vmem:[%s222 + $0x28] sm:$0xff] %v451
        %470 = vst [vmem:[%s222 + $0x30] sm:$0xff] %v456
        %471 = vst [vmem:[%s222 + $0x38] sm:$0xff] %v461
        %s472 = sand.u32 %s95, 1
        %s473 = scalar_lea.sflag [#allocation5], %s472
        %s474 = sand.u32 %s95, 1
        %s475 = smul.addr %s474, 64
        %s476 = scalar_lea.vmem [#allocation9], %s475
        // Predicated region
        $region52: #{tpu_custom_call.1} parent=31 // pred_check
          %p477 = pneg %p105
        $region53: #{tpu_custom_call.1} parent=31 // pred_check_branch
          %479 = sbr.rel (%p477) target = $region55
        $region54: #{tpu_custom_call.1} parent=31 // pred_region
          %s480 = smul.u32 8, %s19
          %s481 = ssub.s32 15, %s480
          %p482 = scmp.lt.s32.totalorder %s481, 8
          %s483 = scalar_select %p482, %s481, 8
          %s484 = smul.u32 128, %s483
          %s486 = ssub.s32 1024, %s484
          %487 = vsyncadd %s473, %s486
          %p488 = scmp.ne.s32.totalorder 0, %s484
          %s489 = smul.addr %s480, 128
          %s490 = scalar_lea.hbm %s3, %s489
          %s491 = smul.u32 8, %s483
          %s492 = sshll.u32 %s476, 4
          %s493 = int_to_ptr.vmem [resolvable:$true] %s492
          %s494 = sshll.u32 %s491, 4
          %498 = dma.vmem_to_hbm [thread:$0]  (%p488), %s493, %s494, %s490, %s473, 128, 128, 8
        $region55: #{tpu_custom_call.1} parent=31 // pred_fallthru
          _
      $region32: #{tpu_custom_call.1} parent=5 // pred_fallthru
        _
      %p499 = scmp.le.s32.totalorder 2, %s14
      // Predicated region
      $region56: #{tpu_custom_call.1} parent=5 // pred_check
        %p500 = pneg %p499
      $region57: #{tpu_custom_call.1} parent=5 // pred_check_branch
        %502 = sbr.rel (%p500) target = $region59
      $region58: #{tpu_custom_call.1} parent=5 // pred_region
        %s503 = ssub.s32 %s14, 2
        // Predicated region
        $region60: #{tpu_custom_call.1} parent=58 // pred_check
          %p504 = pneg %p111
        $region61: #{tpu_custom_call.1} parent=58 // pred_check_branch
          %506 = sbr.rel (%p504) target = $region63
        $region62: #{tpu_custom_call.1} parent=58 // pred_region
          %s507 = sand.u32 %s96, 1
          %s508 = scalar_lea.sflag [#allocation5], %s507
          %s509 = sand.u32 %s96, 1
          %s510 = smul.addr %s509, 64
          %s511 = scalar_lea.vmem [#allocation9], %s510
          %512 = dma.done %s508, 1024
        $region63: #{tpu_custom_call.1} parent=58 // pred_fallthru
          _
      $region59: #{tpu_custom_call.1} parent=5 // pred_fallthru
        _
    $region6: #{tpu_custom_call.1} parent=1 // loop_footer
      %s18 = sadd.s32 1, %s14
    $region7: #{tpu_custom_call.1} parent=1 // loop_footer_branch
      %13 = sbr.rel target = $region3
    $region8: #{tpu_custom_call.1} parent=1 // loop_exit
      _
    %513 = vsyncpa [#allocation4], 1
    %s514 = scalar_lea.sflag [#allocation4], 1
    %515 = vsyncpa %s514, 1
    %516 = vsyncpa [#allocation7], 1
    %517 = vsyncpa [#allocation5], 1
    %s518 = scalar_lea.sflag [#allocation5], 1
    %519 = vsyncpa %s518, 1

</llo_original>
